<compile_context>
chip_gen: v6e
topology: v6e:2x2x1
jax: 0.10.0
libtpu: 0.0.40
codegen_flags: <defaults>
</compile_context>

<pallas_src>
import jax
import jax.numpy as jnp
from jax import lax
from jax.experimental import pallas as pl
from jax.experimental.pallas import tpu as pltpu


def _round_up(x, m):
    return ((x + m - 1) // m) * m


def skipgram_kernel(ctx_idx_ref, tgt_idx_ref,   # (1, TB) int32 indices (VMEM)
                    ctx_t_ref, tgt_t_ref,       # (D, TV) transposed table chunks
                    out_ref,                    # (1, TB) lane-dense logits
                    acc_ctx, acc_tgt):          # (D, TB) f32 gathered-row accumulators
    v = pl.program_id(1)
    nv = pl.num_programs(1)
    tv = ctx_t_ref.shape[1]
    tb = out_ref.shape[1]

    @pl.when(v == 0)
    def _():
        acc_ctx[...] = jnp.zeros_like(acc_ctx)
        acc_tgt[...] = jnp.zeros_like(acc_tgt)

    base = v * tv
    ctx_idx = ctx_idx_ref[...] - base            # (1, TB) local index within chunk
    tgt_idx = tgt_idx_ref[...] - base

    # One-hot selection matrices for this vocab chunk, batch along the lane axis.
    vocab_iota = lax.broadcasted_iota(jnp.int32, (tv, tb), 0)
    oh_ctx = jnp.where(vocab_iota == ctx_idx, 1.0, 0.0).astype(ctx_t_ref.dtype)
    oh_tgt = jnp.where(vocab_iota == tgt_idx, 1.0, 0.0).astype(tgt_t_ref.dtype)

    # MXU gather: (D, TV) @ (TV, TB) -> (D, TB); accumulate across vocab chunks.
    acc_ctx[...] += lax.dot_general(
        ctx_t_ref[...], oh_ctx,
        dimension_numbers=(((1,), (0,)), ((), ())),
        preferred_element_type=jnp.float32)
    acc_tgt[...] += lax.dot_general(
        tgt_t_ref[...], oh_tgt,
        dimension_numbers=(((1,), (0,)), ((), ())),
        preferred_element_type=jnp.float32)

    @pl.when(v == nv - 1)
    def _():
        prod = acc_ctx[...] * acc_tgt[...]                       # (D, TB) on the VPU
        out_ref[...] = jnp.sum(prod, axis=0, keepdims=True).astype(out_ref.dtype)


def _choose_vocab_chunk(D, TB, tab_bytes, vmem_budget_bytes):
    # Per-vocab-row working-set cost of one grid step:
    #   2 tables x 2 pipeline buffers x D row-bytes   (streamed table chunks)
    # + 2 one-hot intermediates x TB x 4 bytes        (f32 one-hot columns)
    per_row = 2 * 2 * D * tab_bytes + 2 * TB * 4
    fixed = 2 * D * TB * 4 + 4 * 2 * TB * 4          # accumulators + idx/out blocks
    avail = max(vmem_budget_bytes - fixed, per_row * 128)
    return max(128, int(avail // per_row))


def skipgram_forward(x, ctx_emb, tgt_emb, *, block_b=512, vocab_chunk=None,
                     vmem_budget_bytes=24 * 1024 * 1024):
    """Pallas implementation of SkipGramModel.forward.

    Args:
      x: (B, 2) integer array of [context_idx, target_idx] pairs.
      ctx_emb: (vocab, dim) float context embedding table.
      tgt_emb: (vocab, dim) float target embedding table.
    Returns:
      (B,) float32 logits.
    """
    B = x.shape[0]
    V, D = ctx_emb.shape
    tab_bytes = jnp.dtype(ctx_emb.dtype).itemsize

    # ---- batch tiling (lane-dense output tiles) ----
    if B > block_b:
        TB = _round_up(block_b, 128)       # multi-block: tile must be 128-aligned
    else:
        TB = _round_up(max(B, 1), 8)       # single block: sublane-aligned is enough
    B_pad = _round_up(B, TB)
    NB = B_pad // TB

    # ---- vocab chunking (stream tables through VMEM under an explicit budget) ----
    tv_cap = vocab_chunk if vocab_chunk is not None else _choose_vocab_chunk(
        D, TB, tab_bytes, vmem_budget_bytes)
    if tv_cap >= V:
        TV, V_pad = V, V                   # single chunk (small vocab)
    else:
        TV = max(128, (int(tv_cap) // 128) * 128)
        V_pad = _round_up(V, TV)
    NV = V_pad // TV

    # ---- host-side layout plumbing (plain JAX, one-time) ----
    ctx_t = ctx_emb
    tgt_t = tgt_emb
    if V_pad != V:
        ctx_t = jnp.pad(ctx_t, ((0, V_pad - V), (0, 0)))
        tgt_t = jnp.pad(tgt_t, ((0, V_pad - V), (0, 0)))
    ctx_t = ctx_t.T                         # (D, V_pad): vocab on the lane axis
    tgt_t = tgt_t.T

    idx = jnp.clip(x.astype(jnp.int32), 0, V - 1)   # OOB-safe indices
    ctx_idx = idx[:, 0].reshape(1, B)
    tgt_idx = idx[:, 1].reshape(1, B)
    if B_pad != B:
        pad = ((0, 0), (0, B_pad - B))
        ctx_idx = jnp.pad(ctx_idx, pad)     # padded entries gather row 0, sliced off
        tgt_idx = jnp.pad(tgt_idx, pad)

    out = pl.pallas_call(
        skipgram_kernel,
        out_shape=jax.ShapeDtypeStruct((1, B_pad), jnp.float32),
        grid_spec=pltpu.PrefetchScalarGridSpec(
            num_scalar_prefetch=0,
            grid=(NB, NV),
            in_specs=[
                pl.BlockSpec((1, TB), lambda i, v: (0, i)),    # context indices
                pl.BlockSpec((1, TB), lambda i, v: (0, i)),    # target indices
                pl.BlockSpec((D, TV), lambda i, v: (0, v)),    # ctx table chunk
                pl.BlockSpec((D, TV), lambda i, v: (0, v)),    # tgt table chunk
            ],
            out_specs=pl.BlockSpec((1, TB), lambda i, v: (0, i)),
            scratch_shapes=[
                pltpu.VMEM((D, TB), jnp.float32),
                pltpu.VMEM((D, TB), jnp.float32),
            ],
        ),
        compiler_params=pltpu.CompilerParams(
            # Batch blocks are independent output tiles -> core-shardable on
            # v7x; vocab chunks accumulate into scratch -> "arbitrary".
            dimension_semantics=("parallel", "arbitrary"),
            # Explicit scoped-VMEM limit, safely under every generation's
            # physical VMEM (v7x: 64 MiB/TC); chunk sizing targets ~24 MiB.
            vmem_limit_bytes=48 * 1024 * 1024,
        ),
    )(ctx_idx, tgt_idx, ctx_t, tgt_t)

    return out[0, :B]


def get_embeddings(ctx_emb, tgt_emb):
    # Plain-JAX glue, matches SkipGramModel.get_embeddings.
    return (ctx_emb + tgt_emb) / 2


if __name__ == "__main__":
    # --- small config matching the module (single batch block, single vocab chunk) ---
    vocab_size = 50
    embedding_dim = 32
    batch = 8

    key = jax.random.PRNGKey(0)
    k_ctx, k_tgt, k_x = jax.random.split(key, 3)

    # nn.Embedding default init ~ N(0, 1)
    ctx_emb = jax.random.normal(k_ctx, (vocab_size, embedding_dim), dtype=jnp.float32)
    tgt_emb = jax.random.normal(k_tgt, (vocab_size, embedding_dim), dtype=jnp.float32)
    x = jax.random.randint(k_x, (batch, 2), 0, vocab_size, dtype=jnp.int32)

    logits = skipgram_forward(x, ctx_emb, tgt_emb)
    logits = jax.block_until_ready(logits)

    ref = jnp.sum(ctx_emb[x[:, 0]] * tgt_emb[x[:, 1]], axis=1)
    assert logits.shape == (batch,)
    assert jnp.allclose(logits, ref, atol=1e-5, rtol=1e-5)

    # --- also exercise the multi-batch-block / streamed-vocab-chunk path ---
    v2, d2, b2 = 300, 32, 300
    kc, kt, kx = jax.random.split(jax.random.PRNGKey(1), 3)
    ctx2 = jax.random.normal(kc, (v2, d2), dtype=jnp.float32)
    tgt2 = jax.random.normal(kt, (v2, d2), dtype=jnp.float32)
    x2 = jax.random.randint(kx, (b2, 2), 0, v2, dtype=jnp.int32)
    out2 = jax.block_until_ready(
        skipgram_forward(x2, ctx2, tgt2, block_b=128, vocab_chunk=128))
    ref2 = jnp.sum(ctx2[x2[:, 0]] * tgt2[x2[:, 1]], axis=1)
    assert out2.shape == (b2,)
    assert jnp.allclose(out2, ref2, atol=1e-4, rtol=1e-4)

    print("KERNEL_OK")
</pallas_src>

<mosaic_0001>
module attributes {stable_mosaic.version = 11 : i64} {
  func.func @skipgram_kernel(%arg0: i32, %arg1: i32, %arg2: memref<1x8xi32, #tpu.memory_space<vmem>>, %arg3: memref<1x8xi32, #tpu.memory_space<vmem>>, %arg4: memref<32x50xf32, #tpu.memory_space<vmem>>, %arg5: memref<32x50xf32, #tpu.memory_space<vmem>>, %arg6: memref<1x8xf32, #tpu.memory_space<vmem>>, %arg7: memref<32x8xf32, #tpu.memory_space<vmem>>, %arg8: memref<32x8xf32, #tpu.memory_space<vmem>>) attributes {dimension_semantics = [#tpu.dimension_semantics<parallel>, #tpu.dimension_semantics<arbitrary>], iteration_bounds = array<i64: 1, 1>, scalar_prefetch = 0 : i64, scratch_operands = 2 : i64, tpu.core_type = #tpu.core_type<tc>, window_params = [{transform_indices = @transform_0, window_bounds = array<i64: 1, 8>}, {transform_indices = @transform_1, window_bounds = array<i64: 1, 8>}, {transform_indices = @transform_2, window_bounds = array<i64: 32, 50>}, {transform_indices = @transform_3, window_bounds = array<i64: 32, 50>}, {transform_indices = @transform_4, window_bounds = array<i64: 1, 8>}]} {
    %c0_i32 = arith.constant 0 : i32
    %0 = arith.cmpi eq, %arg1, %c0_i32 : i32
    %1 = arith.extui %0 : i1 to i32
    %c0_i32_0 = arith.constant 0 : i32
    %2 = arith.cmpi ne, %1, %c0_i32_0 : i32
    scf.if %2 {
      %cst_23 = arith.constant 0.000000e+00 : f32
      %34 = vector.broadcast %cst_23 : f32 to vector<32x8xf32>
      %c0_24 = arith.constant 0 : index
      %c0_25 = arith.constant 0 : index
      %35 = vector.load %arg7[%c0_24, %c0_25] : memref<32x8xf32, #tpu.memory_space<vmem>>, vector<32x8xf32>
      tpu.vector_store %arg7[%c0_24, %c0_25], %34 {strides = array<i32>} : memref<32x8xf32, #tpu.memory_space<vmem>>, vector<32x8xf32>,
      %cst_26 = arith.constant 0.000000e+00 : f32
      %36 = vector.broadcast %cst_26 : f32 to vector<32x8xf32>
      %c0_27 = arith.constant 0 : index
      %c0_28 = arith.constant 0 : index
      %37 = vector.load %arg8[%c0_27, %c0_28] : memref<32x8xf32, #tpu.memory_space<vmem>>, vector<32x8xf32>
      tpu.vector_store %arg8[%c0_27, %c0_28], %36 {strides = array<i32>} : memref<32x8xf32, #tpu.memory_space<vmem>>, vector<32x8xf32>,
    } else {
    }
    %c50_i32 = arith.constant 50 : i32
    %3 = arith.muli %arg1, %c50_i32 : i32
    %c0 = arith.constant 0 : index
    %c0_1 = arith.constant 0 : index
    %4 = vector.load %arg2[%c0, %c0_1] : memref<1x8xi32, #tpu.memory_space<vmem>>, vector<1x8xi32>
    %5 = vector.broadcast %3 : i32 to vector<1x8xi32>
    %6 = arith.subi %4, %5 : vector<1x8xi32>
    %c0_2 = arith.constant 0 : index
    %c0_3 = arith.constant 0 : index
    %7 = vector.load %arg3[%c0_2, %c0_3] : memref<1x8xi32, #tpu.memory_space<vmem>>, vector<1x8xi32>
    %8 = vector.broadcast %3 : i32 to vector<1x8xi32>
    %9 = arith.subi %7, %8 : vector<1x8xi32>
    %10 = tpu.iota {dimensions = array<i32: 0>} : vector<50x8xi32>
    %11 = vector.broadcast %6 : vector<1x8xi32> to vector<50x8xi32>
    %12 = arith.cmpi eq, %10, %11 : vector<50x8xi32>
    %cst = arith.constant 1.000000e+00 : f32
    %cst_4 = arith.constant 0.000000e+00 : f32
    %13 = vector.broadcast %cst : f32 to vector<50x8xf32>
    %14 = vector.broadcast %cst_4 : f32 to vector<50x8xf32>
    %15 = arith.select %12, %13, %14 : vector<50x8xi1>, vector<50x8xf32>
    %16 = vector.broadcast %9 : vector<1x8xi32> to vector<50x8xi32>
    %17 = arith.cmpi eq, %10, %16 : vector<50x8xi32>
    %cst_5 = arith.constant 1.000000e+00 : f32
    %cst_6 = arith.constant 0.000000e+00 : f32
    %18 = vector.broadcast %cst_5 : f32 to vector<50x8xf32>
    %19 = vector.broadcast %cst_6 : f32 to vector<50x8xf32>
    %20 = arith.select %17, %18, %19 : vector<50x8xi1>, vector<50x8xf32>
    %c0_7 = arith.constant 0 : index
    %c0_8 = arith.constant 0 : index
    %21 = vector.load %arg7[%c0_7, %c0_8] : memref<32x8xf32, #tpu.memory_space<vmem>>, vector<32x8xf32>
    %c0_9 = arith.constant 0 : index
    %c0_10 = arith.constant 0 : index
    %22 = vector.load %arg4[%c0_9, %c0_10] : memref<32x50xf32, #tpu.memory_space<vmem>>, vector<32x50xf32>
    %cst_11 = arith.constant dense<0.000000e+00> : vector<32x8xf32>
    %23 = tpu.matmul %22, %15, %cst_11 {dimension_numbers = #tpu.dot_dimension_numbers<[1], [0], [0], [1], [0, 0, 1, 1], [], []>} : vector<32x50xf32>, vector<50x8xf32>, vector<32x8xf32> -> vector<32x8xf32>
    %24 = arith.addf %21, %23 : vector<32x8xf32>
    %c0_12 = arith.constant 0 : index
    %c0_13 = arith.constant 0 : index
    %25 = vector.load %arg7[%c0_12, %c0_13] : memref<32x8xf32, #tpu.memory_space<vmem>>, vector<32x8xf32>
    tpu.vector_store %arg7[%c0_12, %c0_13], %24 {strides = array<i32>} : memref<32x8xf32, #tpu.memory_space<vmem>>, vector<32x8xf32>,
    %c0_14 = arith.constant 0 : index
    %c0_15 = arith.constant 0 : index
    %26 = vector.load %arg8[%c0_14, %c0_15] : memref<32x8xf32, #tpu.memory_space<vmem>>, vector<32x8xf32>
    %c0_16 = arith.constant 0 : index
    %c0_17 = arith.constant 0 : index
    %27 = vector.load %arg5[%c0_16, %c0_17] : memref<32x50xf32, #tpu.memory_space<vmem>>, vector<32x50xf32>
    %cst_18 = arith.constant dense<0.000000e+00> : vector<32x8xf32>
    %28 = tpu.matmul %27, %20, %cst_18 {dimension_numbers = #tpu.dot_dimension_numbers<[1], [0], [0], [1], [0, 0, 1, 1], [], []>} : vector<32x50xf32>, vector<50x8xf32>, vector<32x8xf32> -> vector<32x8xf32>
    %29 = arith.addf %26, %28 : vector<32x8xf32>
    %c0_19 = arith.constant 0 : index
    %c0_20 = arith.constant 0 : index
    %30 = vector.load %arg8[%c0_19, %c0_20] : memref<32x8xf32, #tpu.memory_space<vmem>>, vector<32x8xf32>
    tpu.vector_store %arg8[%c0_19, %c0_20], %29 {strides = array<i32>} : memref<32x8xf32, #tpu.memory_space<vmem>>, vector<32x8xf32>,
    %c0_i32_21 = arith.constant 0 : i32
    %31 = arith.cmpi eq, %arg1, %c0_i32_21 : i32
    %32 = arith.extui %31 : i1 to i32
    %c0_i32_22 = arith.constant 0 : i32
    %33 = arith.cmpi ne, %32, %c0_i32_22 : i32
    scf.if %33 {
      %c0_23 = arith.constant 0 : index
      %c0_24 = arith.constant 0 : index
      %34 = vector.load %arg7[%c0_23, %c0_24] : memref<32x8xf32, #tpu.memory_space<vmem>>, vector<32x8xf32>
      %c0_25 = arith.constant 0 : index
      %c0_26 = arith.constant 0 : index
      %35 = vector.load %arg8[%c0_25, %c0_26] : memref<32x8xf32, #tpu.memory_space<vmem>>, vector<32x8xf32>
      %36 = arith.mulf %34, %35 : vector<32x8xf32>
      %cst_27 = arith.constant dense<0.000000e+00> : vector<8xf32>
      %37 = vector.multi_reduction <add>, %36, %cst_27 [0] : vector<32x8xf32> to vector<8xf32>
      %38 = vector.shape_cast %37 : vector<8xf32> to vector<1x8xf32>
      %c0_28 = arith.constant 0 : index
      %c0_29 = arith.constant 0 : index
      %39 = vector.load %arg6[%c0_28, %c0_29] : memref<1x8xf32, #tpu.memory_space<vmem>>, vector<1x8xf32>
      tpu.vector_store %arg6[%c0_28, %c0_29], %38 {strides = array<i32>} : memref<1x8xf32, #tpu.memory_space<vmem>>, vector<1x8xf32>,
    } else {
    }
    return
  }
  func.func @transform_0(%arg0: i32, %arg1: i32) -> (i32, i32) {
    %c0_i32 = arith.constant 0 : i32
    %c0_i32_0 = arith.constant 0 : i32
    return %c0_i32, %arg0 : i32, i32
  }
  func.func @transform_1(%arg0: i32, %arg1: i32) -> (i32, i32) {
    %c0_i32 = arith.constant 0 : i32
    %c0_i32_0 = arith.constant 0 : i32
    return %c0_i32, %arg0 : i32, i32
  }
  func.func @transform_2(%arg0: i32, %arg1: i32) -> (i32, i32) {
    %c0_i32 = arith.constant 0 : i32
    %c0_i32_0 = arith.constant 0 : i32
    return %c0_i32, %arg1 : i32, i32
  }
  func.func @transform_3(%arg0: i32, %arg1: i32) -> (i32, i32) {
    %c0_i32 = arith.constant 0 : i32
    %c0_i32_0 = arith.constant 0 : i32
    return %c0_i32, %arg1 : i32, i32
  }
  func.func @transform_4(%arg0: i32, %arg1: i32) -> (i32, i32) {
    %c0_i32 = arith.constant 0 : i32
    %c0_i32_0 = arith.constant 0 : i32
    return %c0_i32, %arg0 : i32, i32
  }
}

</mosaic_0001>

<llo_original>
// kernel: tpu_custom_call.1
$region0: #{tpu_custom_call.1}
  #allocation0 [shape = 'u32[]', space=smem, size = 0x4, offset = 0x4, fixed_abs, tag = 'smem constant byte address 0x4 - core index']
  #allocation1 [shape = 'u32[144,128]{1,0:T(1,128)}', space=vmem, size = 0x12000, scoped, tag = 'internal scratch']
  #allocation2 [shape = 'f32[32,8]{1,0:T(8,128)}', space=vmem, size = 0x4000, scoped, tag = 'scratch operand']
  #allocation3 [shape = 'f32[32,8]{1,0:T(8,128)}', space=vmem, size = 0x4000, scoped, tag = 'scratch operand']
  %s0 = inlined_call_operand.hbm [shape: s32[1,8], index: 0, kind: input, shape index: {}]
  %s1 = inlined_call_operand.vmem [shape: s32[1,8], index: 1, kind: input, shape index: {}]
  %s2 = inlined_call_operand.hbm [shape: f32[32,50], index: 2, kind: input, shape index: {}]
  %s3 = inlined_call_operand.hbm [shape: f32[32,50], index: 3, kind: input, shape index: {}]
  %s4 = inlined_call_operand.hbm [shape: f32[1,8], index: 4, kind: output, shape index: {}]
  %s5 = sld [smem:[#allocation0]]
  $region46: #{tpu_custom_call.1} parent=0
    _
  %s7 = ssub.s32 1, %s5
  %s8 = scalar_select 0, %s7, %s5
  $region1: #{tpu_custom_call.1} parent=0
    #allocation4 [shape = 'u8[512]{0}', space=vmem, size = 0x400, scoped, tag = 'input window, operand 0, single buffered']
    #allocation5 [shape = 's32[1]{0}', space=sflag, size = 0x4, scoped, tag = 'scoped memory for tpu_custom_call.1']
    #allocation6 [shape = 's32[1]{0}', space=sflag, size = 0x4, scoped, tag = 'scoped memory for tpu_custom_call.1']
    #allocation7 [shape = 'u8[16384]{0}', space=vmem, size = 0x4000, scoped, tag = 'input window, operand 2, single buffered']
    #allocation8 [shape = 's32[1]{0}', space=sflag, size = 0x4, scoped, tag = 'scoped memory for tpu_custom_call.1']
    #allocation9 [shape = 'u8[16384]{0}', space=vmem, size = 0x4000, scoped, tag = 'input window, operand 3, single buffered']
    #allocation10 [shape = 'u8[512]{0}', space=vmem, size = 0x400, scoped, tag = 'output window, operand 0, single buffered']
    %9 = vsyncpa [#allocation5], 0
    %10 = vsyncpa [#allocation8], 0
    %11 = vsyncpa [#allocation6], 0
    // Predicated region
    $region2: #{tpu_custom_call.1} parent=1 // pred_check
      _
    $region3: #{tpu_custom_call.1} parent=1 // pred_check_branch
      %13 = sbr.rel (0) target = $region5
    $region4: #{tpu_custom_call.1} parent=1 // pred_region
      %s15 = ssub.s32 16, 16
      %16 = vsyncadd [#allocation5], %s15
      %s18 = sshll.u32 [#allocation4], 4
      %s19 = int_to_ptr.vmem [resolvable:$true] %s18
      %21 = dma.hbm_to_vmem [thread:$0]  %s0, 16, %s19, [#allocation5]
    $region5: #{tpu_custom_call.1} parent=1 // pred_fallthru
      _
    // Predicated region
    $region6: #{tpu_custom_call.1} parent=1 // pred_check
      _
    $region7: #{tpu_custom_call.1} parent=1 // pred_check_branch
      %23 = sbr.rel (0) target = $region9
    $region8: #{tpu_custom_call.1} parent=1 // pred_region
      _
    $region9: #{tpu_custom_call.1} parent=1 // pred_fallthru
      _
    // Predicated region
    $region10: #{tpu_custom_call.1} parent=1 // pred_check
      _
    $region11: #{tpu_custom_call.1} parent=1 // pred_check_branch
      %25 = sbr.rel (0) target = $region13
    $region12: #{tpu_custom_call.1} parent=1 // pred_region
      %s27 = ssub.s32 512, 512
      %28 = vsyncadd [#allocation8], %s27
      %s29 = sshll.u32 [#allocation7], 4
      %s30 = int_to_ptr.vmem [resolvable:$true] %s29
      %35 = dma.hbm_to_vmem [thread:$0]  %s2, 512, %s30, [#allocation8], 128, 128, 8
    $region13: #{tpu_custom_call.1} parent=1 // pred_fallthru
      _
    // Predicated region
    $region14: #{tpu_custom_call.1} parent=1 // pred_check
      _
    $region15: #{tpu_custom_call.1} parent=1 // pred_check_branch
      %37 = sbr.rel (0) target = $region17
    $region16: #{tpu_custom_call.1} parent=1 // pred_region
      %s39 = ssub.s32 512, 512
      %40 = vsyncadd [#allocation8], %s39
      %s41 = sshll.u32 [#allocation9], 4
      %s42 = int_to_ptr.vmem [resolvable:$true] %s41
      %47 = dma.hbm_to_vmem [thread:$0]  %s3, 512, %s42, [#allocation8], 128, 128, 8
    $region17: #{tpu_custom_call.1} parent=1 // pred_fallthru
      _
    // Predicated region
    $region18: #{tpu_custom_call.1} parent=1 // pred_check
      _
    $region19: #{tpu_custom_call.1} parent=1 // pred_check_branch
      %49 = sbr.rel (0) target = $region21
    $region20: #{tpu_custom_call.1} parent=1 // pred_region
      %50 = dma.done [#allocation5], 16
    $region21: #{tpu_custom_call.1} parent=1 // pred_fallthru
      _
    // Predicated region
    $region22: #{tpu_custom_call.1} parent=1 // pred_check
      _
    $region23: #{tpu_custom_call.1} parent=1 // pred_check_branch
      %52 = sbr.rel (0) target = $region25
    $region24: #{tpu_custom_call.1} parent=1 // pred_region
      %53 = dma.done [#allocation8], 512
    $region25: #{tpu_custom_call.1} parent=1 // pred_fallthru
      _
    // Predicated region
    $region26: #{tpu_custom_call.1} parent=1 // pred_check
      _
    $region27: #{tpu_custom_call.1} parent=1 // pred_check_branch
      %55 = sbr.rel (0) target = $region29
    $region28: #{tpu_custom_call.1} parent=1 // pred_region
      %56 = dma.done [#allocation8], 512
    $region29: #{tpu_custom_call.1} parent=1 // pred_fallthru
      _
    %p57 = scmp.eq.s32.totalorder 0, 0
    // Predicated region
    $region30: #{tpu_custom_call.1} parent=1 // pred_check
      %p58 = pneg %p57
    $region31: #{tpu_custom_call.1} parent=1 // pred_check_branch
      %60 = sbr.rel (%p58) target = $region33
    $region32: #{tpu_custom_call.1} parent=1 // pred_region
      %vm61 = vcmask 64512
      %62 = vst.msk [vmem:[#allocation2] sm:$0xff] %vm61, 0.0
      %63 = vst.msk [vmem:[#allocation2 + $0x8] sm:$0xff] %vm61, 0.0
      %64 = vst.msk [vmem:[#allocation2 + $0x10] sm:$0xff] %vm61, 0.0
      %65 = vst.msk [vmem:[#allocation2 + $0x18] sm:$0xff] %vm61, 0.0
      %66 = vst.msk [vmem:[#allocation3] sm:$0xff] %vm61, 0.0
      %67 = vst.msk [vmem:[#allocation3 + $0x8] sm:$0xff] %vm61, 0.0
      %68 = vst.msk [vmem:[#allocation3 + $0x10] sm:$0xff] %vm61, 0.0
      %69 = vst.msk [vmem:[#allocation3 + $0x18] sm:$0xff] %vm61, 0.0
    $region33: #{tpu_custom_call.1} parent=1 // pred_fallthru
      _
    %s70 = smul.u32 0, 50
    %v71 = vld [vmem:[#allocation4] sm:$0x1]
    %v72 = vstv %s70
    %v73 = vsub.s32 %v71, %v72
    %v74 = vld [vmem:[%s1] sm:$0x1]
    %v75 = vsub.s32 %v74, %v72
    %v76 = vlaneseq
    %v77 = vshrl.u32 %v76, 7
    %v78 = vadd.s32 %v77, 8
    %v79 = vadd.s32 %v77, 16
    %v80 = vadd.s32 %v77, 24
    %v81 = vadd.s32 %v77, 32
    %v82 = vadd.s32 %v77, 40
    %v83 = vadd.s32 %v77, 48
    %v84 = vlaneseq
    %v85 = vshrl.u32 %v84, 7
    %v86 = vsub.s32 0, %v85
    %v87 = vrot.slane %v73, %v86
    %vm88 = vcmp.eq.s32.totalorder %v77, %v87
    %vm89 = vcmp.eq.s32.totalorder %v78, %v87
    %vm90 = vcmp.eq.s32.totalorder %v79, %v87
    %vm91 = vcmp.eq.s32.totalorder %v80, %v87
    %vm92 = vcmp.eq.s32.totalorder %v81, %v87
    %vm93 = vcmp.eq.s32.totalorder %v82, %v87
    %vm94 = vcmp.eq.s32.totalorder %v83, %v87
    %v95 = vsel %vm88, 1.0, 0.0
    %v96 = vsel %vm89, 1.0, 0.0
    %v97 = vsel %vm90, 1.0, 0.0
    %v98 = vsel %vm91, 1.0, 0.0
    %v99 = vsel %vm92, 1.0, 0.0
    %v100 = vsel %vm93, 1.0, 0.0
    %v101 = vsel %vm94, 1.0, 0.0
    %v102 = vlaneseq
    %v103 = vshrl.u32 %v102, 7
    %v104 = vsub.s32 0, %v103
    %v105 = vrot.slane %v75, %v104
    %vm106 = vcmp.eq.s32.totalorder %v77, %v105
    %vm107 = vcmp.eq.s32.totalorder %v78, %v105
    %vm108 = vcmp.eq.s32.totalorder %v79, %v105
    %vm109 = vcmp.eq.s32.totalorder %v80, %v105
    %vm110 = vcmp.eq.s32.totalorder %v81, %v105
    %vm111 = vcmp.eq.s32.totalorder %v82, %v105
    %vm112 = vcmp.eq.s32.totalorder %v83, %v105
    %v113 = vsel %vm106, 1.0, 0.0
    %v114 = vsel %vm107, 1.0, 0.0
    %v115 = vsel %vm108, 1.0, 0.0
    %v116 = vsel %vm109, 1.0, 0.0
    %v117 = vsel %vm110, 1.0, 0.0
    %v118 = vsel %vm111, 1.0, 0.0
    %v119 = vsel %vm112, 1.0, 0.0
    %v120 = vld [vmem:[#allocation2] sm:$0xff]
    %v121 = vld [vmem:[#allocation2 + $0x8] sm:$0xff]
    %v122 = vld [vmem:[#allocation2 + $0x10] sm:$0xff]
    %v123 = vld [vmem:[#allocation2 + $0x18] sm:$0xff]
    %v124 = vld [vmem:[#allocation7] sm:$0xff]
    %v125 = vld [vmem:[#allocation7 + $0x8] sm:$0xff]
    %v126 = vld [vmem:[#allocation7 + $0x10] sm:$0xff]
    %v127 = vld [vmem:[#allocation7 + $0x18] sm:$0xff]
    %vm128 = vcmask 408576
    %v130 = vsel %vm128, %v124, 0
    %v133 = vsel %vm128, %v125, 0
    %v136 = vsel %vm128, %v126, 0
    %v139 = vsel %vm128, %v127, 0
    %vm141 = vcmask 1041408
    %v143 = vsel %vm141, %v101, 0
    %145 = vmatprep.subr.mxu0 0.0
    %146 = vmatpush1.msra.mxu0 0.0
    %147 = vmatprep.subr.mxu0 0.0
    %148 = vmatpush1.msra.mxu0 0.0
    %149 = vmatprep.subr.mxu0 0.0
    %150 = vmatpush1.msra.mxu0 0.0
    %151 = vmatprep.subr.mxu0 0.0
    %152 = vmatpush1.msra.mxu0 0.0
    %153 = vmatprep.subr.mxu0 0.0
    %154 = vmatpush1.msra.mxu0 0.0
    %155 = vmatprep.subr.mxu0 0.0
    %156 = vmatpush1.msra.mxu0 0.0
    %157 = vmatprep.subr.mxu0 0.0
    %158 = vmatpush1.msra.mxu0 0.0
    %159 = vmatprep.subr.mxu0 0.0
    %160 = vmatpush1.msra.mxu0 0.0
    %161 = vmatprep.subr.mxu0 0.0
    %162 = vmatpush1.msra.mxu0 0.0
    %163 = vmatprep.subr.mxu0 0.0
    %164 = vmatpush1.msra.mxu0 %v143
    %165 = vmatprep.subr.mxu0 0.0
    %166 = vmatpush1.msra.mxu0 %v100
    %167 = vmatprep.subr.mxu0 0.0
    %168 = vmatpush1.msra.mxu0 %v99
    %169 = vmatprep.subr.mxu0 0.0
    %170 = vmatpush1.msra.mxu0 %v98
    %171 = vmatprep.subr.mxu0 0.0
    %172 = vmatpush1.msra.mxu0 %v97
    %173 = vmatprep.subr.mxu0 0.0
    %174 = vmatpush1.msra.mxu0 %v96
    %175 = vmatprep.subr.mxu0 0.0
    %176 = vmatpush1.msra.mxu0 %v95
    %177 = vmatprep.subr.mxu0 0.0
    %178 = vmatpush2.msra.mxu0 0.0
    %179 = vmatprep.subr.mxu0 0.0
    %180 = vmatpush2.msra.mxu0 0.0
    %181 = vmatprep.subr.mxu0 0.0
    %182 = vmatpush2.msra.mxu0 0.0
    %183 = vmatprep.subr.mxu0 0.0
    %184 = vmatpush2.msra.mxu0 0.0
    %185 = vmatprep.subr.mxu0 0.0
    %186 = vmatpush2.msra.mxu0 0.0
    %187 = vmatprep.subr.mxu0 0.0
    %188 = vmatpush2.msra.mxu0 0.0
    %189 = vmatprep.subr.mxu0 0.0
    %190 = vmatpush2.msra.mxu0 0.0
    %191 = vmatprep.subr.mxu0 0.0
    %192 = vmatpush2.msra.mxu0 0.0
    %193 = vmatprep.subr.mxu0 0.0
    %194 = vmatpush2.msra.mxu0 0.0
    %195 = vmatprep.subr.mxu0 0.0
    %196 = vmatpush2.msra.mxu0 0.0
    %197 = vmatprep.subr.mxu0 0.0
    %198 = vmatpush2.msra.mxu0 0.0
    %199 = vmatprep.subr.mxu0 0.0
    %200 = vmatpush2.msra.mxu0 0.0
    %201 = vmatprep.subr.mxu0 0.0
    %202 = vmatpush2.msra.mxu0 0.0
    %203 = vmatprep.subr.mxu0 0.0
    %204 = vmatpush2.msra.mxu0 0.0
    %205 = vmatprep.subr.mxu0 0.0
    %206 = vmatpush2.msra.mxu0 0.0
    %207 = vmatprep.subr.mxu0 0.0
    %208 = vmatpush2.msra.mxu0 0.0
    %209 = vmatprep.mubr.f32.mxu0 0.0
    %210 = vmatmul.mubr.f32.gmra.mxu0 %v130
    %v211 = vpop.f32.mrf.mxu0
    %v212 = vadd.f32 0.0, %v211
    %v213 = vpop.f32.mrf.mxu0
    %214 = vmatprep.mubr.f32.mxu0 0.0
    %215 = vmatmul.mubr.f32.gmra.mxu0 %v133
    %v216 = vpop.f32.mrf.mxu0
    %v217 = vadd.f32 0.0, %v216
    %v218 = vpop.f32.mrf.mxu0
    %219 = vmatprep.mubr.f32.mxu0 0.0
    %220 = vmatmul.mubr.f32.gmra.mxu0 %v136
    %v221 = vpop.f32.mrf.mxu0
    %v222 = vadd.f32 0.0, %v221
    %v223 = vpop.f32.mrf.mxu0
    %224 = vmatprep.mubr.f32.mxu0 0.0
    %225 = vmatmul.mubr.f32.gmra.mxu0 %v139
    %v226 = vpop.f32.mrf.mxu0
    %v227 = vadd.f32 0.0, %v226
    %v228 = vpop.f32.mrf.mxu0
    %229 = vdwg.mxu0
    %v230 = vadd.f32 %v120, %v212
    %v231 = vadd.f32 %v121, %v217
    %v232 = vadd.f32 %v122, %v222
    %v233 = vadd.f32 %v123, %v227
    %vm234 = vcmask 64512
    %235 = vst.msk [vmem:[#allocation2] sm:$0xff] %vm234, %v230
    %236 = vst.msk [vmem:[#allocation2 + $0x8] sm:$0xff] %vm234, %v231
    %237 = vst.msk [vmem:[#allocation2 + $0x10] sm:$0xff] %vm234, %v232
    %238 = vst.msk [vmem:[#allocation2 + $0x18] sm:$0xff] %vm234, %v233
    %v239 = vld [vmem:[#allocation3] sm:$0xff]
    %v240 = vld [vmem:[#allocation3 + $0x8] sm:$0xff]
    %v241 = vld [vmem:[#allocation3 + $0x10] sm:$0xff]
    %v242 = vld [vmem:[#allocation3 + $0x18] sm:$0xff]
    %v243 = vld [vmem:[#allocation9] sm:$0xff]
    %v244 = vld [vmem:[#allocation9 + $0x8] sm:$0xff]
    %v245 = vld [vmem:[#allocation9 + $0x10] sm:$0xff]
    %v246 = vld [vmem:[#allocation9 + $0x18] sm:$0xff]
    %v248 = vsel %vm128, %v243, 0
    %v251 = vsel %vm128, %v244, 0
    %v254 = vsel %vm128, %v245, 0
    %v257 = vsel %vm128, %v246, 0
    %v260 = vsel %vm141, %v119, 0
    %262 = vmatprep.subr.mxu0 0.0
    %263 = vmatpush1.msra.mxu0 0.0
    %264 = vmatprep.subr.mxu0 0.0
    %265 = vmatpush1.msra.mxu0 0.0
    %266 = vmatprep.subr.mxu0 0.0
    %267 = vmatpush1.msra.mxu0 0.0
    %268 = vmatprep.subr.mxu0 0.0
    %269 = vmatpush1.msra.mxu0 0.0
    %270 = vmatprep.subr.mxu0 0.0
    %271 = vmatpush1.msra.mxu0 0.0
    %272 = vmatprep.subr.mxu0 0.0
    %273 = vmatpush1.msra.mxu0 0.0
    %274 = vmatprep.subr.mxu0 0.0
    %275 = vmatpush1.msra.mxu0 0.0
    %276 = vmatprep.subr.mxu0 0.0
    %277 = vmatpush1.msra.mxu0 0.0
    %278 = vmatprep.subr.mxu0 0.0
    %279 = vmatpush1.msra.mxu0 0.0
    %280 = vmatprep.subr.mxu0 0.0
    %281 = vmatpush1.msra.mxu0 %v260
    %282 = vmatprep.subr.mxu0 0.0
    %283 = vmatpush1.msra.mxu0 %v118
    %284 = vmatprep.subr.mxu0 0.0
    %285 = vmatpush1.msra.mxu0 %v117
    %286 = vmatprep.subr.mxu0 0.0
    %287 = vmatpush1.msra.mxu0 %v116
    %288 = vmatprep.subr.mxu0 0.0
    %289 = vmatpush1.msra.mxu0 %v115
    %290 = vmatprep.subr.mxu0 0.0
    %291 = vmatpush1.msra.mxu0 %v114
    %292 = vmatprep.subr.mxu0 0.0
    %293 = vmatpush1.msra.mxu0 %v113
    %294 = vmatprep.subr.mxu0 0.0
    %295 = vmatpush2.msra.mxu0 0.0
    %296 = vmatprep.subr.mxu0 0.0
    %297 = vmatpush2.msra.mxu0 0.0
    %298 = vmatprep.subr.mxu0 0.0
    %299 = vmatpush2.msra.mxu0 0.0
    %300 = vmatprep.subr.mxu0 0.0
    %301 = vmatpush2.msra.mxu0 0.0
    %302 = vmatprep.subr.mxu0 0.0
    %303 = vmatpush2.msra.mxu0 0.0
    %304 = vmatprep.subr.mxu0 0.0
    %305 = vmatpush2.msra.mxu0 0.0
    %306 = vmatprep.subr.mxu0 0.0
    %307 = vmatpush2.msra.mxu0 0.0
    %308 = vmatprep.subr.mxu0 0.0
    %309 = vmatpush2.msra.mxu0 0.0
    %310 = vmatprep.subr.mxu0 0.0
    %311 = vmatpush2.msra.mxu0 0.0
    %312 = vmatprep.subr.mxu0 0.0
    %313 = vmatpush2.msra.mxu0 0.0
    %314 = vmatprep.subr.mxu0 0.0
    %315 = vmatpush2.msra.mxu0 0.0
    %316 = vmatprep.subr.mxu0 0.0
    %317 = vmatpush2.msra.mxu0 0.0
    %318 = vmatprep.subr.mxu0 0.0
    %319 = vmatpush2.msra.mxu0 0.0
    %320 = vmatprep.subr.mxu0 0.0
    %321 = vmatpush2.msra.mxu0 0.0
    %322 = vmatprep.subr.mxu0 0.0
    %323 = vmatpush2.msra.mxu0 0.0
    %324 = vmatprep.subr.mxu0 0.0
    %325 = vmatpush2.msra.mxu0 0.0
    %326 = vmatprep.mubr.f32.mxu0 0.0
    %327 = vmatmul.mubr.f32.gmra.mxu0 %v248
    %v328 = vpop.f32.mrf.mxu0
    %v329 = vadd.f32 0.0, %v328
    %v330 = vpop.f32.mrf.mxu0
    %331 = vmatprep.mubr.f32.mxu0 0.0
    %332 = vmatmul.mubr.f32.gmra.mxu0 %v251
    %v333 = vpop.f32.mrf.mxu0
    %v334 = vadd.f32 0.0, %v333
    %v335 = vpop.f32.mrf.mxu0
    %336 = vmatprep.mubr.f32.mxu0 0.0
    %337 = vmatmul.mubr.f32.gmra.mxu0 %v254
    %v338 = vpop.f32.mrf.mxu0
    %v339 = vadd.f32 0.0, %v338
    %v340 = vpop.f32.mrf.mxu0
    %341 = vmatprep.mubr.f32.mxu0 0.0
    %342 = vmatmul.mubr.f32.gmra.mxu0 %v257
    %v343 = vpop.f32.mrf.mxu0
    %v344 = vadd.f32 0.0, %v343
    %v345 = vpop.f32.mrf.mxu0
    %346 = vdwg.mxu0
    %v347 = vadd.f32 %v239, %v329
    %v348 = vadd.f32 %v240, %v334
    %v349 = vadd.f32 %v241, %v339
    %v350 = vadd.f32 %v242, %v344
    %351 = vst.msk [vmem:[#allocation3] sm:$0xff] %vm234, %v347
    %352 = vst.msk [vmem:[#allocation3 + $0x8] sm:$0xff] %vm234, %v348
    %353 = vst.msk [vmem:[#allocation3 + $0x10] sm:$0xff] %vm234, %v349
    %354 = vst.msk [vmem:[#allocation3 + $0x18] sm:$0xff] %vm234, %v350
    // Predicated region
    $region34: #{tpu_custom_call.1} parent=1 // pred_check
      %p355 = pneg %p57
    $region35: #{tpu_custom_call.1} parent=1 // pred_check_branch
      %357 = sbr.rel (%p355) target = $region37
    $region36: #{tpu_custom_call.1} parent=1 // pred_region
      %v358 = vld [vmem:[#allocation2] sm:$0xff]
      %v359 = vld [vmem:[#allocation2 + $0x8] sm:$0xff]
      %v360 = vld [vmem:[#allocation2 + $0x10] sm:$0xff]
      %v361 = vld [vmem:[#allocation2 + $0x18] sm:$0xff]
      %v362 = vld [vmem:[#allocation3] sm:$0xff]
      %v363 = vld [vmem:[#allocation3 + $0x8] sm:$0xff]
      %v364 = vld [vmem:[#allocation3 + $0x10] sm:$0xff]
      %v365 = vld [vmem:[#allocation3 + $0x18] sm:$0xff]
      %v366 = vmul.f32 %v358, %v362
      %v367 = vmul.f32 %v359, %v363
      %v368 = vmul.f32 %v360, %v364
      %v369 = vmul.f32 %v361, %v365
      %v370 = vsel %vm234, %v366, 0.0
      %v371 = vsel %vm234, %v367, 0.0
      %v372 = vadd.f32 %v370, %v371
      %v373 = vsel %vm234, %v368, 0.0
      %v374 = vadd.f32 %v372, %v373
      %v375 = vsel %vm234, %v369, 0.0
      %v376 = vadd.f32 %v374, %v375
      %v377 = vrot.slane %v376, 4
      %v378 = vadd.f32 %v376, %v377
      %v379 = vrot.slane %v378, 2
      %v380 = vadd.f32 %v378, %v379
      %v381 = vrot.slane %v380, 1
      %v382 = vadd.f32 %v380, %v381
      %vm383 = vcmask 57344
      %384 = vst.msk [vmem:[#allocation10] sm:$0x1] %vm383, %v382
    $region37: #{tpu_custom_call.1} parent=1 // pred_fallthru
      _
    // Predicated region
    $region38: #{tpu_custom_call.1} parent=1 // pred_check
      _
    $region39: #{tpu_custom_call.1} parent=1 // pred_check_branch
      %386 = sbr.rel (0) target = $region41
    $region40: #{tpu_custom_call.1} parent=1 // pred_region
      %s388 = ssub.s32 16, 16
      %389 = vsyncadd [#allocation6], %s388
      %s391 = sshll.u32 [#allocation10], 4
      %s392 = int_to_ptr.vmem [resolvable:$true] %s391
      %394 = dma.vmem_to_hbm [thread:$0]  %s392, 16, %s4, [#allocation6]
    $region41: #{tpu_custom_call.1} parent=1 // pred_fallthru
      _
    // Predicated region
    $region42: #{tpu_custom_call.1} parent=1 // pred_check
      _
    $region43: #{tpu_custom_call.1} parent=1 // pred_check_branch
      %396 = sbr.rel (0) target = $region45
    $region44: #{tpu_custom_call.1} parent=1 // pred_region
      %397 = dma.done [#allocation6], 16
    $region45: #{tpu_custom_call.1} parent=1 // pred_fallthru
      _
    %398 = vsyncpa [#allocation5], 1
    %399 = vsyncpa [#allocation8], 1
    %400 = vsyncpa [#allocation6], 1

</llo_original>
